<compile_context>
chip_gen: v6e
topology: v6e:2x2x1
jax: 0.10.0
libtpu: 0.0.40
codegen_flags: <defaults>
</compile_context>

<pallas_src>
import functools
import math

import jax
import jax.numpy as jnp
from jax.experimental import pallas as pl
from jax.experimental.pallas import tpu as pltpu

MIN_NORM = 1e-15          # geoopt/hgcn min_norm clamp
PROJ_EPS = 4e-3           # float32 projection epsilon: maxnorm = (1 - eps)/sqrt(c)
ATANH_EPS = 1e-7          # fp32-safe artanh clamp (reference uses 1e-15, sub-fp32-ulp;
                          # deliberate deviation, only matters within 1e-7 of the boundary)


def _artanh(z):
    z = jnp.clip(z, -1.0 + ATANH_EPS, 1.0 - ATANH_EPS)
    return 0.5 * (jnp.log1p(z) - jnp.log1p(-z))


def hypact_kernel(x_ref, o_ref, *, c_in, c_out):
    x = x_ref[...].astype(jnp.float32)
    sc_in = jnp.float32(math.sqrt(c_in))
    sc_out = jnp.float32(math.sqrt(c_out))

    # Two cross-lane reductions per tile (||x||, ||relu(x)||); everything else is
    # per-row [tm,1] scalar math plus ONE full-tile broadcast multiply at the end.
    x_norm = jnp.maximum(jnp.sqrt(jnp.sum(x * x, axis=-1, keepdims=True)), MIN_NORM)
    r = jnp.maximum(x, 0.0)
    r_norm = jnp.sqrt(jnp.sum(r * r, axis=-1, keepdims=True))

    # ---- decoder: logmap0 scale (proj_tan0 is identity on PoincareBall) ----
    # s_dec > 0  =>  relu(s_dec * x) == s_dec * relu(x), and ||u|| == s_dec * ||relu(x)||.
    a = sc_in * x_norm
    s_dec = _artanh(a) / a                                        # [tm, 1]

    # ---- encoder (expmap0 on u = s_dec*relu(x)) fused with proj clip ----
    #   s_enc        = tanh(sc_out*||u||) / (sc_out*||u||)
    #   ||gamma||    = tanh(sc_out*||u||) / sc_out
    #   s_clip       = min(1, maxnorm/||gamma||) = min(1, (1-eps)/t)
    #   s_enc*s_clip = min(t, 1-eps) / (sc_out*||u||)   -> single divide
    u_norm = jnp.maximum(s_dec * r_norm, MIN_NORM)                # [tm, 1]
    t = jnp.tanh(sc_out * u_norm)
    row_scale = s_dec * jnp.minimum(t, jnp.float32(1.0 - PROJ_EPS)) / (sc_out * u_norm)

    # Recompute relu(x) from the still-resident input tile instead of carrying `r`
    # live across both reductions (saves a full-tile f32 temporary / vst+vld traffic).
    o_ref[...] = (jnp.maximum(x, 0.0) * row_scale).astype(o_ref.dtype)


def hypact(x, *, c_in=1.0, c_out=2.0, tm=None):
    """HypAct forward. x: [N, D] points on PoincareBall(c_in); returns points on PoincareBall(c_out)."""
    n, d = x.shape
    itemsize = jnp.dtype(x.dtype).itemsize
    sublane = {4: 8, 2: 16, 1: 32}.get(itemsize, 8)   # dtype-aware sublane tile

    if tm is None:
        # (a) VMEM cap: 2 arrays (in+out) x 2 pipeline buffers in the input dtype,
        #     plus ~3 full-tile f32 temporaries inside the kernel body.
        per_row = d * (4 * itemsize + 3 * 4)
        tm = (16 << 20) // max(per_row, 1)
        # (b) bandwidth: ~512 rows already reaches ~85% of the HBM roofline; bigger
        #     tiles buy little and cost VMEM / pipeline granularity.
        tm = min(tm, 512)
        # (c) pipelining / megacore: aim for >= 8 grid steps so prologue/epilogue DMAs
        #     are hidden and v7x's two TensorCores each get multiple steady-state steps.
        tm = min(tm, pl.cdiv(n, 8))
    tm = min(tm, n)
    tm = max(sublane, (tm // sublane) * sublane)

    # Partial last block is handled by Pallas (masked writeback); no jnp.pad / out[:n]
    # HBM copies. The math is purely row-wise, so garbage rows in the tail of the last
    # input tile never reach the output.
    grid = pl.cdiv(n, tm)

    # Explicit scoped-VMEM budget so large-D tiles don't trip generation-specific defaults.
    per_tile = tm * d * (4 * itemsize + 3 * 4)
    vmem_limit = int(min(48 << 20, max(32 << 20, 2 * per_tile)))

    kernel = functools.partial(hypact_kernel, c_in=float(c_in), c_out=float(c_out))
    return pl.pallas_call(
        kernel,
        out_shape=jax.ShapeDtypeStruct((n, d), x.dtype),
        grid_spec=pltpu.PrefetchScalarGridSpec(
            num_scalar_prefetch=0,
            grid=(grid,),
            # tuning knob (v7x): pipeline_mode=pl.Buffered(3) on the input spec can
            # smooth read/write HBM contention; left at the default depth here.
            in_specs=[pl.BlockSpec((tm, d), lambda i: (i, 0))],
            out_specs=pl.BlockSpec((tm, d), lambda i: (i, 0)),
        ),
        compiler_params=pltpu.CompilerParams(
            dimension_semantics=("parallel",),
            vmem_limit_bytes=vmem_limit),
    )(x)


# ---------------- pure-JAX reference (for correctness check) ----------------
def _expmap0(u, c):
    sc = jnp.sqrt(c)
    n = jnp.maximum(jnp.linalg.norm(u, axis=-1, keepdims=True), MIN_NORM)
    return jnp.tanh(sc * n) * u / (sc * n)


def _proj(x, c):
    sc = jnp.sqrt(c)
    n = jnp.maximum(jnp.linalg.norm(x, axis=-1, keepdims=True), MIN_NORM)
    maxnorm = (1.0 - PROJ_EPS) / sc
    return jnp.where(n > maxnorm, x / n * maxnorm, x)


def _logmap0(p, c):
    sc = jnp.sqrt(c)
    n = jnp.maximum(jnp.linalg.norm(p, axis=-1, keepdims=True), MIN_NORM)
    z = jnp.clip(sc * n, -1.0 + ATANH_EPS, 1.0 - ATANH_EPS)
    return 0.5 * (jnp.log1p(z) - jnp.log1p(-z)) * p / (n * sc)


def hypact_ref(x, c_in, c_out):
    u = jnp.maximum(_logmap0(x, c_in), 0.0)
    return _proj(_expmap0(u, c_out), c_out)


if __name__ == "__main__":
    C_IN, C_OUT = 1.0, 2.0
    N, D = 64, 128

    key = jax.random.PRNGKey(0)
    raw = jax.random.normal(key, (N, D), dtype=jnp.float32)
    # Module assumes inputs already lie on the PoincareBall with curvature c_in:
    # map deterministic Euclidean features onto the ball (input prep, plain JAX glue).
    x = _proj(_expmap0(raw, C_IN), C_IN)

    # f32, divisible N: tm=8, grid=8 (>=8 steps for pipelining / both v7x cores).
    out = jax.block_until_ready(hypact(x, c_in=C_IN, c_out=C_OUT))
    ref = hypact_ref(x, C_IN, C_OUT)
    assert out.shape == x.shape and out.dtype == x.dtype
    assert jnp.allclose(out, ref, atol=1e-5, rtol=1e-5), "mismatch vs reference (f32)"

    # Ragged row count: exercises the Pallas partial-last-block path (no pad/slice copies).
    x2 = x[:50]
    out2 = jax.block_until_ready(hypact(x2, c_in=C_IN, c_out=C_OUT))
    assert out2.shape == x2.shape
    assert jnp.allclose(out2, hypact_ref(x2, C_IN, C_OUT), atol=1e-5, rtol=1e-5), \
        "mismatch vs reference (ragged)"

    # bf16 input: sublane tile rounds tm to a multiple of 16; math runs in f32 in-kernel.
    xb = x.astype(jnp.bfloat16)
    out3 = jax.block_until_ready(hypact(xb, c_in=C_IN, c_out=C_OUT))
    ref3 = hypact_ref(xb.astype(jnp.float32), C_IN, C_OUT)
    assert out3.dtype == jnp.bfloat16 and out3.shape == xb.shape
    assert jnp.allclose(out3.astype(jnp.float32), ref3, atol=2e-2, rtol=2e-2), \
        "mismatch vs reference (bf16)"

    print("KERNEL_OK")
</pallas_src>

<mosaic_0001>
module attributes {stable_mosaic.version = 11 : i64} {
  func.func @hypact_kernel(%arg0: i32, %arg1: memref<8x128xf32, #tpu.memory_space<vmem>>, %arg2: memref<8x128xf32, #tpu.memory_space<vmem>>) attributes {dimension_semantics = [#tpu.dimension_semantics<parallel>], iteration_bounds = array<i64: 8>, scalar_prefetch = 0 : i64, scratch_operands = 0 : i64, tpu.core_type = #tpu.core_type<tc>, window_params = [{transform_indices = @transform_0, window_bounds = array<i64: 8, 128>}, {transform_indices = @transform_1, window_bounds = array<i64: 8, 128>}]} {
    %c0 = arith.constant 0 : index
    %c0_0 = arith.constant 0 : index
    %0 = vector.load %arg1[%c0, %c0_0] : memref<8x128xf32, #tpu.memory_space<vmem>>, vector<8x128xf32>
    %1 = arith.mulf %0, %0 : vector<8x128xf32>
    %cst = arith.constant dense<0.000000e+00> : vector<8xf32>
    %2 = vector.multi_reduction <add>, %1, %cst [1] : vector<8x128xf32> to vector<8xf32>
    %3 = vector.shape_cast %2 : vector<8xf32> to vector<8x1xf32>
    %4 = math.sqrt %3 : vector<8x1xf32>
    %cst_1 = arith.constant 1.000000e-15 : f32
    %5 = vector.broadcast %cst_1 : f32 to vector<8x1xf32>
    %6 = arith.maximumf %4, %5 : vector<8x1xf32>
    %cst_2 = arith.constant 0.000000e+00 : f32
    %7 = vector.broadcast %cst_2 : f32 to vector<8x128xf32>
    %8 = arith.maximumf %0, %7 : vector<8x128xf32>
    %9 = arith.mulf %8, %8 : vector<8x128xf32>
    %cst_3 = arith.constant dense<0.000000e+00> : vector<8xf32>
    %10 = vector.multi_reduction <add>, %9, %cst_3 [1] : vector<8x128xf32> to vector<8xf32>
    %11 = vector.shape_cast %10 : vector<8xf32> to vector<8x1xf32>
    %12 = math.sqrt %11 : vector<8x1xf32>
    %cst_4 = arith.constant 1.000000e+00 : f32
    %13 = vector.broadcast %cst_4 : f32 to vector<8x1xf32>
    %14 = arith.mulf %13, %6 : vector<8x1xf32>
    %cst_5 = arith.constant -0.99999988 : f32
    %cst_6 = arith.constant 0.99999988 : f32
    %15 = vector.broadcast %cst_5 : f32 to vector<8x1xf32>
    %16 = arith.maximumf %15, %14 : vector<8x1xf32>
    %17 = vector.broadcast %cst_6 : f32 to vector<8x1xf32>
    %18 = arith.minimumf %17, %16 : vector<8x1xf32>
    %19 = math.log1p %18 : vector<8x1xf32>
    %cst_7 = arith.constant 0.000000e+00 : f32
    %20 = vector.broadcast %cst_7 : f32 to vector<8x1xf32>
    %21 = arith.subf %20, %18 : vector<8x1xf32>
    %22 = math.log1p %21 : vector<8x1xf32>
    %23 = arith.subf %19, %22 : vector<8x1xf32>
    %cst_8 = arith.constant 5.000000e-01 : f32
    %24 = vector.broadcast %cst_8 : f32 to vector<8x1xf32>
    %25 = arith.mulf %24, %23 : vector<8x1xf32>
    %26 = arith.divf %25, %14 : vector<8x1xf32>
    %27 = arith.mulf %26, %12 : vector<8x1xf32>
    %cst_9 = arith.constant 1.000000e-15 : f32
    %28 = vector.broadcast %cst_9 : f32 to vector<8x1xf32>
    %29 = arith.maximumf %27, %28 : vector<8x1xf32>
    %cst_10 = arith.constant 1.41421354 : f32
    %30 = vector.broadcast %cst_10 : f32 to vector<8x1xf32>
    %31 = arith.mulf %30, %29 : vector<8x1xf32>
    %32 = math.tanh %31 : vector<8x1xf32>
    %cst_11 = arith.constant 0.995999991 : f32
    %33 = vector.broadcast %cst_11 : f32 to vector<8x1xf32>
    %34 = arith.minimumf %32, %33 : vector<8x1xf32>
    %35 = arith.mulf %26, %34 : vector<8x1xf32>
    %cst_12 = arith.constant 1.41421354 : f32
    %36 = vector.broadcast %cst_12 : f32 to vector<8x1xf32>
    %37 = arith.mulf %36, %29 : vector<8x1xf32>
    %38 = arith.divf %35, %37 : vector<8x1xf32>
    %cst_13 = arith.constant 0.000000e+00 : f32
    %39 = vector.broadcast %cst_13 : f32 to vector<8x128xf32>
    %40 = arith.maximumf %0, %39 : vector<8x128xf32>
    %41 = vector.broadcast %38 : vector<8x1xf32> to vector<8x128xf32>
    %42 = arith.mulf %40, %41 : vector<8x128xf32>
    %c0_14 = arith.constant 0 : index
    %c0_15 = arith.constant 0 : index
    %43 = vector.load %arg2[%c0_14, %c0_15] : memref<8x128xf32, #tpu.memory_space<vmem>>, vector<8x128xf32>
    tpu.vector_store %arg2[%c0_14, %c0_15], %42 {strides = array<i32>} : memref<8x128xf32, #tpu.memory_space<vmem>>, vector<8x128xf32>,
    return
  }
  func.func @transform_0(%arg0: i32) -> (i32, i32) {
    %c0_i32 = arith.constant 0 : i32
    %c0_i32_0 = arith.constant 0 : i32
    return %arg0, %c0_i32 : i32, i32
  }
  func.func @transform_1(%arg0: i32) -> (i32, i32) {
    %c0_i32 = arith.constant 0 : i32
    %c0_i32_0 = arith.constant 0 : i32
    return %arg0, %c0_i32 : i32, i32
  }
}

</mosaic_0001>

<llo_original>
// kernel: tpu_custom_call.1
$region0: #{tpu_custom_call.1}
  #allocation0 [shape = 'u32[]', space=smem, size = 0x4, offset = 0x4, fixed_abs, tag = 'smem constant byte address 0x4 - core index']
  #allocation1 [shape = 'u32[144,128]{1,0:T(1,128)}', space=vmem, size = 0x12000, scoped, tag = 'internal scratch']
  %s0 = inlined_call_operand.hbm [shape: f32[64,128], index: 0, kind: input, shape index: {}]
  %s1 = inlined_call_operand.hbm [shape: f32[64,128], index: 1, kind: output, shape index: {}]
  %s2 = sld [smem:[#allocation0]]
  $region41: #{tpu_custom_call.1} parent=0
    _
  %s4 = ssub.s32 1, %s2
  %s5 = scalar_select 0, %s4, %s2
  $region1: #{tpu_custom_call.1} parent=0
    #allocation2 [shape = 'u8[8192]{0}', space=vmem, size = 0x2000, scoped, tag = 'input window, operand 0']
    #allocation3 [shape = 's32[2]{0}', space=sflag, size = 0x8, scoped, tag = 'scoped memory for tpu_custom_call.1']
    #allocation4 [shape = 's32[2]{0}', space=sflag, size = 0x8, scoped, tag = 'scoped memory for tpu_custom_call.1']
    #allocation5 [shape = 'u8[8192]{0}', space=vmem, size = 0x2000, scoped, tag = 'output window, operand 0']
    %6 = vsyncpa [#allocation3], 0
    %s7 = scalar_lea.sflag [#allocation3], 1
    %8 = vsyncpa %s7, 0
    %9 = vsyncpa [#allocation4], 0
    %s10 = scalar_lea.sflag [#allocation4], 1
    %11 = vsyncpa %s10, 0
    loop: start=0, step=1, limit=10
    $region2: #{tpu_custom_call.1} parent=1 // loop_pre_header
      _
    $region3: #{tpu_custom_call.1} parent=1 // loop_header
      %s13 = sphi 0, %s17
      %p14 = scmp.ge.s32.totalorder %s13, 10
      %s23 = sphi 0, %s25
      %s26 = sphi 0, %s23
      %s27 = sphi 0, %s26
      %s43 = sphi 0, %s27
      %s49 = sphi 0, %s51
      %s52 = sphi 0, %s49
      %s53 = sphi 0, %s52
      %s69 = sphi 0, %s53
    $region4: #{tpu_custom_call.1} parent=1 // loop_header_branch
      %16 = sbr.rel (%p14) target = $region8
    $region5: #{tpu_custom_call.1} parent=1 // loop_body
      %s18 = ssub.s32 %s13, 1
      %s19 = ssub.s32 %s13, 2
      %s20 = sadd.s32 %s13, 1
      %s21 = ssub.s32 %s13, %s20
      %p22 = scmp.eq.s32.totalorder %s21, 0
      %s24 = sadd.s32 %s23, 1
      %s25 = scalar_select %p22, %s23, %s24
      %p28 = pneg %p22
      %p29 = scmp.eq.s32.totalorder %s13, 7
      %p30 = por %p28, %p29
      %p31 = scmp.ne.s32.totalorder %s23, %s26
      %p32 = scmp.eq.s32.totalorder %s13, 0
      %p33 = por %p31, %p32
      %p34 = scmp.ne.s32.totalorder %s23, %s26
      %p35 = scmp.eq.s32.totalorder %s18, 7
      %p36 = por %p34, %p35
      %p37 = scmp.ne.s32.totalorder %s26, %s27
      %p38 = scmp.eq.s32.totalorder %s18, 0
      %p39 = por %p37, %p38
      %p40 = scmp.ne.s32.totalorder %s26, %s27
      %p41 = scmp.eq.s32.totalorder %s19, 7
      %p42 = por %p40, %p41
      %p44 = scmp.ne.s32.totalorder %s27, %s43
      %p45 = scmp.eq.s32.totalorder %s19, 0
      %p46 = por %p44, %p45
      %s47 = ssub.s32 %s13, %s20
      %p48 = scmp.eq.s32.totalorder %s47, 0
      %s50 = sadd.s32 %s49, 1
      %s51 = scalar_select %p48, %s49, %s50
      %p54 = pneg %p48
      %p55 = scmp.eq.s32.totalorder %s13, 7
      %p56 = por %p54, %p55
      %p57 = scmp.ne.s32.totalorder %s49, %s52
      %p58 = scmp.eq.s32.totalorder %s13, 0
      %p59 = por %p57, %p58
      %p60 = scmp.ne.s32.totalorder %s49, %s52
      %p61 = scmp.eq.s32.totalorder %s18, 7
      %p62 = por %p60, %p61
      %p63 = scmp.ne.s32.totalorder %s52, %s53
      %p64 = scmp.eq.s32.totalorder %s18, 0
      %p65 = por %p63, %p64
      %p66 = scmp.ne.s32.totalorder %s52, %s53
      %p67 = scmp.eq.s32.totalorder %s19, 7
      %p68 = por %p66, %p67
      %p70 = scmp.ne.s32.totalorder %s53, %s69
      %p71 = scmp.eq.s32.totalorder %s19, 0
      %p72 = por %p70, %p71
      %p73 = scmp.le.s32.totalorder 1, %s13
      %p74 = scmp.lt.s32.totalorder %s13, 9
      %p75 = pnand %p73, %p74
      %p76 = pneg %p75
      // Predicated region
      $region9: #{tpu_custom_call.1} parent=5 // pred_check
        _
      $region10: #{tpu_custom_call.1} parent=5 // pred_check_branch
        %78 = sbr.rel (%p75) target = $region12
      $region11: #{tpu_custom_call.1} parent=5 // pred_region
        %s79 = ssub.s32 %s13, 1
      $region12: #{tpu_custom_call.1} parent=5 // pred_fallthru
        _
      %p80 = scmp.lt.s32.totalorder %s13, 8
      // Predicated region
      $region13: #{tpu_custom_call.1} parent=5 // pred_check
        %p81 = pneg %p80
      $region14: #{tpu_custom_call.1} parent=5 // pred_check_branch
        %83 = sbr.rel (%p81) target = $region16
      $region15: #{tpu_custom_call.1} parent=5 // pred_region
        // Predicated region
        $region17: #{tpu_custom_call.1} parent=15 // pred_check
          %p84 = pneg %p33
        $region18: #{tpu_custom_call.1} parent=15 // pred_check_branch
          %86 = sbr.rel (%p84) target = $region20
        $region19: #{tpu_custom_call.1} parent=15 // pred_region
          %s87 = sand.u32 %s23, 1
          %s88 = scalar_lea.sflag [#allocation3], %s87
          %s89 = sand.u32 %s23, 1
          %s90 = smul.addr %s89, 8
          %s91 = scalar_lea.vmem [#allocation2], %s90
          %s93 = ssub.s32 128, 128
          %94 = vsyncadd %s88, %s93
          %s95 = smul.addr %s13, 128
          %s96 = scalar_lea.hbm %s0, %s95
          %s98 = sshll.u32 %s91, 4
          %s99 = int_to_ptr.vmem [resolvable:$true] %s98
          %101 = dma.hbm_to_vmem [thread:$0]  %s96, 128, %s99, %s88
        $region20: #{tpu_custom_call.1} parent=15 // pred_fallthru
          _
      $region16: #{tpu_custom_call.1} parent=5 // pred_fallthru
        _
      %p102 = scmp.le.s32.totalorder 1, %s13
      %p103 = scmp.lt.s32.totalorder %s13, 9
      %p104 = pnand %p102, %p103
      %p105 = pneg %p104
      // Predicated region
      $region21: #{tpu_custom_call.1} parent=5 // pred_check
        _
      $region22: #{tpu_custom_call.1} parent=5 // pred_check_branch
        %107 = sbr.rel (%p104) target = $region24
      $region23: #{tpu_custom_call.1} parent=5 // pred_region
        %s108 = ssub.s32 %s13, 1
        %s109 = sand.u32 %s26, 1
        %s110 = scalar_lea.sflag [#allocation3], %s109
        %s111 = sand.u32 %s26, 1
        %s112 = smul.addr %s111, 8
        %s113 = scalar_lea.vmem [#allocation2], %s112
        // Predicated region
        $region25: #{tpu_custom_call.1} parent=23 // pred_check
          %p114 = pneg %p39
        $region26: #{tpu_custom_call.1} parent=23 // pred_check_branch
          %116 = sbr.rel (%p114) target = $region28
        $region27: #{tpu_custom_call.1} parent=23 // pred_region
          %117 = dma.done %s110, 128
        $region28: #{tpu_custom_call.1} parent=23 // pred_fallthru
          _
        %s118 = sand.u32 %s26, 1
        %s119 = scalar_lea.sflag [#allocation3], %s118
        %s120 = sand.u32 %s26, 1
        %s121 = smul.addr %s120, 8
        %s122 = scalar_lea.vmem [#allocation2], %s121
        %p123 = pneg %p39
        %p124 = pneg %p36
        %p125 = pneg %p65
        %p126 = pneg %p62
        %s127 = sand.u32 %s52, 1
        %s128 = scalar_lea.sflag [#allocation4], %s127
        %s129 = sand.u32 %s52, 1
        %s130 = smul.addr %s129, 8
        %s131 = scalar_lea.vmem [#allocation5], %s130
        %v132 = vld [vmem:[%s113] sm:$0xff]
        %v133 = vmul.f32 %v132, %v132
        %134 = vadd.xlane.f32.xlu0 %v133
        %v135 = vpop.xlane.xlu0 %134
        %v136 = vrsqrt.pop %v135
        %v137 = vmul.f32 %v135, %v136
        %vm138 = vcmp.eq.f32.partialorder %v135, inf
        %v139 = vsel %vm138, %v135, %v137
        %vm140 = vcmp.eq.f32.partialorder %v135, 0.0
        %v141 = vand.u32 %v135, 2147483648
        %v142 = vsel %vm140, %v141, %v139
        %v143 = vmax.f32 %v142, 1e-15
        %v144 = vmax.f32 %v132, 0.0
        %v145 = vmul.f32 %v144, %v144
        %146 = vadd.xlane.f32.xlu0 %v145
        %v147 = vpop.xlane.xlu0 %146
        %v148 = vrsqrt.pop %v147
        %v149 = vmul.f32 %v147, %v148
        %vm150 = vcmp.eq.f32.partialorder %v147, inf
        %v151 = vsel %vm150, %v147, %v149
        %vm152 = vcmp.eq.f32.partialorder %v147, 0.0
        %v153 = vand.u32 %v147, 2147483648
        %v154 = vsel %vm152, %v153, %v151
        %v155 = vmax.f32 %v143, -0.9999999
        %v156 = vmin.f32 %v155, 0.9999999
        %v157 = vadd.f32 %v156, 1.0
        %v158 = vlog2.pop %v157
        %v159 = vmul.f32 %v158, 0.6931472
        %v160 = vmul.f32 -0.5, %v156
        %v161 = vadd.f32 %v160, 1.0
        %v162 = vmul.f32 %v161, %v156
        %v163 = vand.u32 2147483647, %v156
        %vm164 = vcmp.lt.f32.partialorder %v163, 0.0004427343
        %v165 = vsel %vm164, %v162, %v159
        %v166 = vsub.f32 0.0, %v156
        %v167 = vadd.f32 %v166, 1.0
        %v168 = vlog2.pop %v167
        %v169 = vmul.f32 %v168, 0.6931472
        %v170 = vmul.f32 -0.5, %v166
        %v171 = vadd.f32 %v170, 1.0
        %v172 = vmul.f32 %v171, %v166
        %v173 = vand.u32 2147483647, %v166
        %vm174 = vcmp.lt.f32.partialorder %v173, 0.0004427343
        %v175 = vsel %vm174, %v172, %v169
        %v176 = vsub.f32 %v165, %v175
        %v177 = vmul.f32 %v176, 0.5
        %v178 = vrcp.pop %v143
        %v179 = vmul.f32 %v177, %v178
        %v180 = vmul.f32 %v179, %v154
        %v181 = vmax.f32 %v180, 1e-15
        %v182 = vmul.f32 %v181, 1.4142135
        %v183 = vtanh.pop %v182
        %v184 = vmin.f32 %v183, 0.996
        %v185 = vmul.f32 %v179, %v184
        %v186 = vrcp.pop %v182
        %v187 = vmul.f32 %v185, %v186
        %v188 = vmul.f32 %v144, %v187
        %189 = vst [vmem:[%s131] sm:$0xff] %v188
        %s190 = sand.u32 %s52, 1
        %s191 = scalar_lea.sflag [#allocation4], %s190
        %s192 = sand.u32 %s52, 1
        %s193 = smul.addr %s192, 8
        %s194 = scalar_lea.vmem [#allocation5], %s193
        // Predicated region
        $region29: #{tpu_custom_call.1} parent=23 // pred_check
          %p195 = pneg %p62
        $region30: #{tpu_custom_call.1} parent=23 // pred_check_branch
          %197 = sbr.rel (%p195) target = $region32
        $region31: #{tpu_custom_call.1} parent=23 // pred_region
          %s199 = ssub.s32 128, 128
          %200 = vsyncadd %s191, %s199
          %s201 = smul.addr %s18, 128
          %s202 = scalar_lea.hbm %s1, %s201
          %s204 = sshll.u32 %s194, 4
          %s205 = int_to_ptr.vmem [resolvable:$true] %s204
          %207 = dma.vmem_to_hbm [thread:$0]  %s205, 128, %s202, %s191
        $region32: #{tpu_custom_call.1} parent=23 // pred_fallthru
          _
      $region24: #{tpu_custom_call.1} parent=5 // pred_fallthru
        _
      %p208 = scmp.le.s32.totalorder 2, %s13
      // Predicated region
      $region33: #{tpu_custom_call.1} parent=5 // pred_check
        %p209 = pneg %p208
      $region34: #{tpu_custom_call.1} parent=5 // pred_check_branch
        %211 = sbr.rel (%p209) target = $region36
      $region35: #{tpu_custom_call.1} parent=5 // pred_region
        %s212 = ssub.s32 %s13, 2
        // Predicated region
        $region37: #{tpu_custom_call.1} parent=35 // pred_check
          %p213 = pneg %p68
        $region38: #{tpu_custom_call.1} parent=35 // pred_check_branch
          %215 = sbr.rel (%p213) target = $region40
        $region39: #{tpu_custom_call.1} parent=35 // pred_region
          %s216 = sand.u32 %s53, 1
          %s217 = scalar_lea.sflag [#allocation4], %s216
          %s218 = sand.u32 %s53, 1
          %s219 = smul.addr %s218, 8
          %s220 = scalar_lea.vmem [#allocation5], %s219
          %221 = dma.done %s217, 128
        $region40: #{tpu_custom_call.1} parent=35 // pred_fallthru
          _
      $region36: #{tpu_custom_call.1} parent=5 // pred_fallthru
        _
    $region6: #{tpu_custom_call.1} parent=1 // loop_footer
      %s17 = sadd.s32 1, %s13
    $region7: #{tpu_custom_call.1} parent=1 // loop_footer_branch
      %12 = sbr.rel target = $region3
    $region8: #{tpu_custom_call.1} parent=1 // loop_exit
      _
    %222 = vsyncpa [#allocation3], 1
    %s223 = scalar_lea.sflag [#allocation3], 1
    %224 = vsyncpa %s223, 1
    %225 = vsyncpa [#allocation4], 1
    %s226 = scalar_lea.sflag [#allocation4], 1
    %227 = vsyncpa %s226, 1

</llo_original>
